<compile_context>
chip_gen: v7x
topology: tpu7x:2x2x1
jax: 0.10.0
libtpu: 0.0.40
codegen_flags: <defaults>
</compile_context>

<pallas_src>
import functools

import jax
import jax.numpy as jnp
from jax import lax
from jax.experimental import pallas as pl
from jax.experimental.pallas import tpu as pltpu

_EPS = 1e-20

# Conservative budgets that hold on v5e/v6e (128 MiB physical VMEM) and v7x (64 MiB):
# ~4 MiB blocks, double-buffered in + out stays well under the explicit 32 MiB limit.
_VMEM_LIMIT_BYTES = 32 * 1024 * 1024
_TARGET_BLOCK_BYTES = 4 * 1024 * 1024


def _pick_t_tile(t_total, row_bytes):
    """Largest T tile with block size <= ~4 MiB; multiple of 8 (sublane) or full T."""
    tile = max(1, _TARGET_BLOCK_BYTES // max(int(row_bytes), 1))
    if tile >= t_total:
        return t_total
    return max(8, (tile // 8) * 8)


# ---------------------------------------------------------------- norm-reduction kernel
def _norm_kernel(g_ref, sq_ref, *, t_total):
    t = pl.program_id(0)

    @pl.when(t == 0)
    def _():
        sq_ref[...] = jnp.zeros_like(sq_ref)

    g = g_ref[...].astype(jnp.float32)           # (T_TILE, B*C), lane-dense
    t_tile = g_ref.shape[0]
    if t_total % t_tile != 0:                    # static: emitted only for ragged tail
        row = t * t_tile + lax.broadcasted_iota(jnp.int32, g.shape, 0)
        g = jnp.where(row < t_total, g, 0.0)

    # Output block is resident across the whole grid (constant block index) and acts
    # as the accumulator: one sublane-sum per tile, added into (1, B*C).
    sq_ref[...] += jnp.sum(g * g, axis=0, keepdims=True)


def _batch_grad_norm(g, t_tile=None):
    """Per-batch RMS of the gradient: sqrt(mean over (T, C) of g^2) -> (B,) f32."""
    T, B, C = g.shape
    BC = B * C
    g2 = g.reshape(T, BC)                        # free row-major collapse -> lane-dense
    if t_tile is None:
        t_tile = _pick_t_tile(T, BC * g.dtype.itemsize)
    sumsq = pl.pallas_call(
        functools.partial(_norm_kernel, t_total=T),
        out_shape=jax.ShapeDtypeStruct((1, BC), jnp.float32),
        grid=(pl.cdiv(T, t_tile),),
        in_specs=[pl.BlockSpec((t_tile, BC), lambda t: (t, 0))],
        out_specs=pl.BlockSpec((1, BC), lambda t: (0, 0)),      # resident accumulator
        compiler_params=pltpu.CompilerParams(
            dimension_semantics=("arbitrary",),
            vmem_limit_bytes=_VMEM_LIMIT_BYTES),
    )(g2)
    # Tiny (B*C,) -> (B,) segment reduction + RMS: plain-JAX glue, negligible cost.
    return jnp.sqrt(sumsq.reshape(B, C).sum(axis=1) / jnp.float32(T * C))


# ---------------------------------------------------------------- soft-mask kernel
def _mask_kernel(g_ref, m_ref, o_ref):
    g = g_ref[...].astype(jnp.float32)           # (T_TILE, B*C)
    o_ref[...] = (g * m_ref[...]).astype(o_ref.dtype)   # (1, B*C) broadcasts over T


def _apply_mask(g, mask_b, t_tile=None):
    """g: (T, B, C); mask_b: (B,) f32 per-batch soft mask. Returns masked g (same dtype)."""
    T, B, C = g.shape
    BC = B * C
    g2 = g.reshape(T, BC)                        # lane-dense folded view
    m2 = jnp.broadcast_to(mask_b.astype(jnp.float32)[:, None], (B, C)).reshape(1, BC)
    if t_tile is None:
        t_tile = _pick_t_tile(T, BC * g.dtype.itemsize)
    out = pl.pallas_call(
        _mask_kernel,
        out_shape=jax.ShapeDtypeStruct((T, BC), g.dtype),
        grid=(pl.cdiv(T, t_tile),),
        in_specs=[pl.BlockSpec((t_tile, BC), lambda t: (t, 0)),
                  pl.BlockSpec((1, BC), lambda t: (0, 0))],     # resident, DMA'd once
        out_specs=pl.BlockSpec((t_tile, BC), lambda t: (t, 0)),
        input_output_aliases={0: 0},             # reuse the incoming cotangent buffer
        compiler_params=pltpu.CompilerParams(
            dimension_semantics=("parallel",),   # shards across v7x's 2 TensorCores
            vmem_limit_bytes=_VMEM_LIMIT_BYTES),
    )(g2, m2)
    return out.reshape(T, B, C)


# ---------------------------------------------------------------- custom VJP glue
@functools.partial(jax.custom_vjp, nondiff_argnums=(0, 1))
def _gradient_filter(batch_dim, threshold, x, params):
    del batch_dim, threshold
    # Forward is an exact identity: no kernel, no HBM round trip.
    return x, params


def _gf_fwd(batch_dim, threshold, x, params):
    return _gradient_filter(batch_dim, threshold, x, params), None


def _gf_bwd(batch_dim, threshold, _res, cotangents):
    x_grad, param_grads = cotangents
    ndim = x_grad.ndim
    bdim = batch_dim % ndim
    use_pallas = (ndim == 3) and (bdim == 1)

    if use_pallas:
        norms = _batch_grad_norm(x_grad)                          # (B,) Pallas reduction
    else:
        # Pure-JAX fallback for layouts the Pallas path doesn't cover.
        dims = tuple(d for d in range(ndim) if d != bdim)
        norms = jnp.sqrt(jnp.mean(x_grad.astype(jnp.float32) ** 2, axis=dims))

    B = norms.shape[0]
    # torch.Tensor.median(): lower median of the flattened values
    median_norm = jnp.sort(norms)[(B - 1) // 2]
    cutoff = median_norm * threshold
    inv_mask = (cutoff + norms) / (cutoff + _EPS)                 # (B,)
    mask = 1.0 / (inv_mask + _EPS)                                # (B,)  (matches torch)

    if use_pallas:
        x_grad_out = _apply_mask(x_grad, mask)                    # Pallas elementwise
    else:
        shp = [1] * ndim
        shp[bdim] = B
        x_grad_out = (x_grad * mask.reshape(shp)).astype(x_grad.dtype)

    avg_mask = 1.0 / (jnp.mean(inv_mask) + _EPS)
    # param grads are a uniform scalar rescale -> tiny plain-JAX glue
    param_grads_out = jax.tree_util.tree_map(
        lambda g: (avg_mask * g).astype(g.dtype), param_grads)
    return (x_grad_out, param_grads_out)


_gradient_filter.defvjp(_gf_fwd, _gf_bwd)


def gradient_filter(x, *params, batch_dim=1, threshold=10.0):
    """Matches GradientFilter.forward: returns (x,) + params (identity), with the
    gradient-filtering behaviour attached via custom_vjp."""
    # TODO(synk): torch.jit.is_scripting()/is_jit_tracing() fast path has no JAX
    # equivalent; the filtered-gradient path is always used here.
    x_out, params_out = _gradient_filter(batch_dim, threshold, x, tuple(params))
    return (x_out,) + tuple(params_out)


# ---------------------------------------------------------------- demo / self-check
if __name__ == "__main__":
    key = jax.random.PRNGKey(0)
    kx, kw, kg, kg2 = jax.random.split(key, 4)
    T, B, C = 8, 4, 32                   # B*C = 128 -> lane-dense folded blocks
    x = jax.random.normal(kx, (T, B, C), dtype=jnp.float32)
    w = jax.random.normal(kw, (C, C), dtype=jnp.float32) * 0.05
    b = jnp.zeros((C,), dtype=jnp.float32)

    # forward: identity semantics (no Pallas work in the primal)
    x_out, w_out, b_out = gradient_filter(x, w, b)
    jax.block_until_ready((x_out, w_out, b_out))
    assert jnp.array_equal(x_out, x) and jnp.array_equal(w_out, w) and jnp.array_equal(b_out, b)

    # direct check of the Pallas norm-reduction kernel (single-block path)
    g_test = jax.random.normal(kg, (T, B, C), dtype=jnp.float32) * 3.0
    norms_ref = jnp.sqrt(jnp.mean(g_test ** 2, axis=(0, 2)))
    norms_pallas = _batch_grad_norm(g_test)
    jax.block_until_ready(norms_pallas)
    assert jnp.allclose(norms_pallas, norms_ref, rtol=1e-5, atol=1e-6)

    # direct check of the Pallas mask kernel (aliased output)
    mask_test = jnp.linspace(0.1, 1.0, B, dtype=jnp.float32)
    masked_ref = g_test * mask_test[None, :, None]
    masked = _apply_mask(g_test, mask_test)
    jax.block_until_ready(masked)
    assert jnp.allclose(masked, masked_ref, rtol=1e-6, atol=1e-6)

    # multi-step grid + ragged-tail path (forced small tile, T not divisible)
    T2 = 20
    g_rag = jax.random.normal(kg2, (T2, B, C), dtype=jnp.float32)
    norms_rag = _batch_grad_norm(g_rag, t_tile=8)
    norms_rag_ref = jnp.sqrt(jnp.mean(g_rag ** 2, axis=(0, 2)))
    jax.block_until_ready(norms_rag)
    assert jnp.allclose(norms_rag, norms_rag_ref, rtol=1e-5, atol=1e-6)
    masked_rag = _apply_mask(g_rag, mask_test, t_tile=8)
    jax.block_until_ready(masked_rag)
    assert jnp.allclose(masked_rag, g_rag * mask_test[None, :, None], rtol=1e-6, atol=1e-6)

    # end-to-end VJP (where the filtering compute lives)
    def loss_fn(x_, w_, b_):
        xo, wo, bo = gradient_filter(x_, w_, b_)
        y = jnp.einsum("tbc,cd->tbd", xo, wo) + bo
        return jnp.sum(y * y)

    grads = jax.jit(jax.grad(loss_fn, argnums=(0, 1, 2)))(x, w, b)
    jax.block_until_ready(grads)

    # pure-JAX reference of the torch backward for a sanity check
    def raw_loss(x_, w_, b_):
        y = jnp.einsum("tbc,cd->tbd", x_, w_) + b_
        return jnp.sum(y * y)

    raw_xg, raw_wg, raw_bg = jax.grad(raw_loss, argnums=(0, 1, 2))(x, w, b)

    def torch_ref_backward(x_grad, param_grads, threshold=10.0):
        norms = jnp.sqrt(jnp.mean(x_grad ** 2, axis=(0, 2)))
        med = jnp.sort(norms)[(norms.shape[0] - 1) // 2]
        cutoff = med * threshold
        inv_mask = (cutoff + norms) / (cutoff + _EPS)
        mask = 1.0 / (inv_mask + _EPS)
        xg = x_grad * mask[None, :, None]
        avg_mask = 1.0 / (jnp.mean(inv_mask) + _EPS)
        return xg, [avg_mask * g for g in param_grads]

    ref_xg, (ref_wg, ref_bg) = torch_ref_backward(raw_xg, [raw_wg, raw_bg])
    assert jnp.allclose(grads[0], ref_xg, rtol=1e-5, atol=1e-5)
    assert jnp.allclose(grads[1], ref_wg, rtol=1e-5, atol=1e-5)
    assert jnp.allclose(grads[2], ref_bg, rtol=1e-5, atol=1e-5)

    print("KERNEL_OK")
</pallas_src>

<mosaic_0001>
module attributes {stable_mosaic.version = 11 : i64} {
  func.func @_norm_kernel(%arg0: i32, %arg1: memref<8x128xf32, #tpu.memory_space<vmem>>, %arg2: memref<1x128xf32, #tpu.memory_space<vmem>>) attributes {dimension_semantics = [#tpu.dimension_semantics<arbitrary>], iteration_bounds = array<i64: 1>, scalar_prefetch = 0 : i64, scratch_operands = 0 : i64, tpu.core_type = #tpu.core_type<tc>, window_params = [{transform_indices = @transform_0, window_bounds = array<i64: 8, 128>}, {pipeline_mode = #tpu.pipeline_mode<synchronous>, transform_indices = @transform_1, window_bounds = array<i64: 1, 128>}]} {
    %c0_i32 = arith.constant 0 : i32
    %0 = arith.cmpi eq, %arg0, %c0_i32 : i32
    %1 = arith.extui %0 : i1 to i32
    %c0_i32_0 = arith.constant 0 : i32
    %2 = arith.cmpi ne, %1, %c0_i32_0 : i32
    scf.if %2 {
      %cst_6 = arith.constant 0.000000e+00 : f32
      %10 = vector.broadcast %cst_6 : f32 to vector<1x128xf32>
      %c0_7 = arith.constant 0 : index
      %c0_8 = arith.constant 0 : index
      %11 = vector.load %arg2[%c0_7, %c0_8] : memref<1x128xf32, #tpu.memory_space<vmem>>, vector<1x128xf32>
      tpu.vector_store %arg2[%c0_7, %c0_8], %10 {strides = array<i32>} : memref<1x128xf32, #tpu.memory_space<vmem>>, vector<1x128xf32>,
    } else {
    }
    %c0 = arith.constant 0 : index
    %c0_1 = arith.constant 0 : index
    %3 = vector.load %arg1[%c0, %c0_1] : memref<8x128xf32, #tpu.memory_space<vmem>>, vector<8x128xf32>
    %c0_2 = arith.constant 0 : index
    %c0_3 = arith.constant 0 : index
    %4 = vector.load %arg2[%c0_2, %c0_3] : memref<1x128xf32, #tpu.memory_space<vmem>>, vector<1x128xf32>
    %5 = arith.mulf %3, %3 : vector<8x128xf32>
    %cst = arith.constant dense<0.000000e+00> : vector<128xf32>
    %6 = vector.multi_reduction <add>, %5, %cst [0] : vector<8x128xf32> to vector<128xf32>
    %7 = vector.shape_cast %6 : vector<128xf32> to vector<1x128xf32>
    %8 = arith.addf %4, %7 : vector<1x128xf32>
    %c0_4 = arith.constant 0 : index
    %c0_5 = arith.constant 0 : index
    %9 = vector.load %arg2[%c0_4, %c0_5] : memref<1x128xf32, #tpu.memory_space<vmem>>, vector<1x128xf32>
    tpu.vector_store %arg2[%c0_4, %c0_5], %8 {strides = array<i32>} : memref<1x128xf32, #tpu.memory_space<vmem>>, vector<1x128xf32>,
    return
  }
  func.func @transform_0(%arg0: i32) -> (i32, i32) {
    %c0_i32 = arith.constant 0 : i32
    %c0_i32_0 = arith.constant 0 : i32
    return %arg0, %c0_i32 : i32, i32
  }
  func.func @transform_1(%arg0: i32) -> (i32, i32) {
    %c0_i32 = arith.constant 0 : i32
    %c0_i32_0 = arith.constant 0 : i32
    %c0_i32_1 = arith.constant 0 : i32
    return %c0_i32, %c0_i32_0 : i32, i32
  }
}

</mosaic_0001>

<llo_original>
// kernel: tpu_custom_call.1
$region0: #{tpu_custom_call.1}
  #allocation0 [shape = 'u32[]', space=smem, size = 0x4, offset = 0x4, fixed_abs, tag = 'smem constant byte address 0x4 - core index']
  #allocation1 [shape = 'u32[144,128]{1,0:T(1,128)}', space=vmem, size = 0x12000, scoped, tag = 'internal scratch']
  %s0 = inlined_call_operand.hbm [shape: f32[8,128], index: 0, kind: input, shape index: {}]
  %s1 = inlined_call_operand.hbm [shape: f32[1,128], index: 1, kind: output, shape index: {}]
  %s2 = sld [smem:[#allocation0]]
  $region22: #{tpu_custom_call.1} parent=0
    _
  %s4 = ssub.s32 1, %s2
  %s5 = scalar_select 0, %s4, %s2
  $region1: #{tpu_custom_call.1} parent=0
    #allocation2 [shape = 'u8[4096]{0}', space=vmem, size = 0x1000, scoped, tag = 'input window, operand 0, single buffered']
    #allocation3 [shape = 's32[1]{0}', space=sflag, size = 0x4, scoped, tag = 'scoped memory for tpu_custom_call.1']
    #allocation4 [shape = 's32[1]{0}', space=sflag, size = 0x4, scoped, tag = 'scoped memory for tpu_custom_call.1']
    #allocation5 [shape = 'u8[512]{0}', space=vmem, size = 0x400, scoped, tag = 'output window, operand 0, single buffered']
    %6 = vsyncpa [#allocation3], 0
    %7 = vsyncpa [#allocation4], 0
    // Predicated region
    $region2: #{tpu_custom_call.1} parent=1 // pred_check
      _
    $region3: #{tpu_custom_call.1} parent=1 // pred_check_branch
      %9 = sbr.rel (0) target = $region5
    $region4: #{tpu_custom_call.1} parent=1 // pred_region
      %s11 = ssub.s32 128, 128
      %12 = vsyncadd [#allocation3], %s11
      %s14 = sshll.u32 [#allocation2], 4
      %s15 = int_to_ptr.vmem [resolvable:$true] %s14
      %17 = dma.hbm_to_vmem [thread:$0]  %s0, 128, %s15, [#allocation3]
    $region5: #{tpu_custom_call.1} parent=1 // pred_fallthru
      _
    // Predicated region
    $region6: #{tpu_custom_call.1} parent=1 // pred_check
      _
    $region7: #{tpu_custom_call.1} parent=1 // pred_check_branch
      %19 = sbr.rel (0) target = $region9
    $region8: #{tpu_custom_call.1} parent=1 // pred_region
      %20 = dma.done [#allocation3], 128
    $region9: #{tpu_custom_call.1} parent=1 // pred_fallthru
      _
    %p21 = scmp.eq.s32.totalorder 0, 0
    // Predicated region
    $region10: #{tpu_custom_call.1} parent=1 // pred_check
      %p22 = pneg %p21
    $region11: #{tpu_custom_call.1} parent=1 // pred_check_branch
      %24 = sbr.rel (%p22) target = $region13
    $region12: #{tpu_custom_call.1} parent=1 // pred_region
      %25 = vst [vmem:[#allocation5] sm:$0x1] 0.0
    $region13: #{tpu_custom_call.1} parent=1 // pred_fallthru
      _
    %v26 = vld [vmem:[#allocation2] sm:$0xff]
    %v27 = vld [vmem:[#allocation5] sm:$0x1]
    %v28 = vmul.f32 %v26, %v26
    %v29 = vrot.slane %v28, 4
    %v30 = vadd.f32 %v28, %v29
    %v31 = vrot.slane %v30, 2
    %v32 = vadd.f32 %v30, %v31
    %v33 = vrot.slane %v32, 1
    %v34 = vadd.f32 %v32, %v33
    %v35 = vadd.f32 %v27, %v34
    %36 = vst [vmem:[#allocation5] sm:$0x1] %v35
    // Predicated region
    $region14: #{tpu_custom_call.1} parent=1 // pred_check
      _
    $region15: #{tpu_custom_call.1} parent=1 // pred_check_branch
      %38 = sbr.rel (0) target = $region17
    $region16: #{tpu_custom_call.1} parent=1 // pred_region
      %s40 = ssub.s32 16, 16
      %41 = vsyncadd [#allocation4], %s40
      %s43 = sshll.u32 [#allocation5], 4
      %s44 = int_to_ptr.vmem [resolvable:$true] %s43
      %46 = dma.vmem_to_hbm [thread:$0]  %s44, 16, %s1, [#allocation4]
    $region17: #{tpu_custom_call.1} parent=1 // pred_fallthru
      _
    // Predicated region
    $region18: #{tpu_custom_call.1} parent=1 // pred_check
      _
    $region19: #{tpu_custom_call.1} parent=1 // pred_check_branch
      %48 = sbr.rel (0) target = $region21
    $region20: #{tpu_custom_call.1} parent=1 // pred_region
      %49 = dma.done [#allocation4], 16
    $region21: #{tpu_custom_call.1} parent=1 // pred_fallthru
      _
    %50 = vsyncpa [#allocation3], 1
    %51 = vsyncpa [#allocation4], 1

</llo_original>
